<compile_context>
chip_gen: v7x
topology: tpu7x:2x2x1
jax: 0.10.0
libtpu: 0.0.40
codegen_flags: <defaults>
</compile_context>

<pallas_src>
import functools
import math

import jax
import jax.numpy as jnp
from jax.experimental import pallas as pl
from jax.experimental.pallas import tpu as pltpu

EPS = 1e-5  # torch.nn.BatchNorm2d default


# ---------------------------------------------------------------------------
# Pass 1: x-space statistics.  Per tile: column sums (A,1) and Gram x@x^T (A,A).
# Each grid step writes its own partial blocks -> no resident accumulator, both
# grid axes fully parallel.
# ---------------------------------------------------------------------------
def _stats_kernel(x_ref, colsum_ref, gram_ref):
    x = x_ref[...]                                                  # (A, ts)
    colsum_ref[...] = jnp.sum(x, axis=1, keepdims=True)            # (A, 1)
    gram_ref[...] = jax.lax.dot_general(                            # (A, A)
        x, x, (((1,), (1,)), ((), ())), preferred_element_type=jnp.float32)


# ---------------------------------------------------------------------------
# Pass 2: matmul + folded BN affine; sigmoid only on the B activation rows.
# Channels on sublanes, spatial on lanes -> lane-dense stores into NCHW slabs.
# ---------------------------------------------------------------------------
def _apply_kernel(x_ref, w_ref, scale_ref, shift_ref, pose_ref, a_ref, *, split):
    y = jnp.dot(w_ref[...], x_ref[...], preferred_element_type=jnp.float32)  # (C, ts)
    z = y * scale_ref[...] + shift_ref[...]
    pose_ref[...] = z[:split, :]                  # sublane-aligned (split % 8 == 0)
    a_ref[...] = jax.nn.sigmoid(z[split:, :])     # EUP work only on B rows


def primary_caps_forward(x_nchw, w_pose, w_a, gamma_p, beta_p, gamma_a, beta_a,
                         *, pad=1, max_full_tile=8192, spatial_tile=4096):
    """PrimaryCaps forward. Returns (a, pose) in PyTorch NCHW layout."""
    N, A, H, W = x_nchw.shape
    BP2 = w_pose.shape[1]
    B = w_a.shape[1]
    C = BP2 + B
    f32 = jnp.float32

    # K=1, bias-free conv with zero padding == per-pixel matmul over the spatially
    # padded input.  Pad + reshape only; no layout transpose of the big tensors.
    Hp, Wp = H + 2 * pad, W + 2 * pad
    x = jnp.pad(x_nchw.astype(f32), ((0, 0), (0, 0), (pad, pad), (pad, pad)))
    S = Hp * Wp
    x3 = x.reshape(N, A, S)

    # Spatial tiling: full-S blocks (no padding, no output slicing) unless the
    # (C, S) out block would blow the VMEM budget; then lane-aligned tiles.
    if S <= max_full_tile:
        ts, Sp = S, S
    else:
        ts = spatial_tile                          # multiple of 128
        Sp = pl.cdiv(S, ts) * ts
        x3 = jnp.pad(x3, ((0, 0), (0, 0), (0, Sp - S)))
    nst = Sp // ts
    grid = (N, nst)  # N * nst >= 2 in practice -> v7x megacore can shard it

    # Concatenated conv weights: single lane-dense matmul per tile.
    w_cat = jnp.concatenate([w_pose, w_a], axis=1).astype(f32)      # (A, C)
    w_t = w_cat.T                                                   # (C, A), tiny

    # ---- Pass 1: per-tile x column-sums + Gram matrix ----------------------
    cost1 = pl.CostEstimate(
        flops=int(N * Sp * (2 * A * A + A)),
        transcendentals=0,
        bytes_accessed=int(4 * (N * Sp * A + N * nst * (A + A * A))))
    colsum_parts, gram_parts = pl.pallas_call(
        _stats_kernel,
        grid=grid,
        in_specs=[pl.BlockSpec((None, A, ts), lambda n, s: (n, 0, s))],
        out_specs=(
            pl.BlockSpec((None, None, A, 1), lambda n, s: (n, s, 0, 0)),
            pl.BlockSpec((None, None, A, A), lambda n, s: (n, s, 0, 0)),
        ),
        out_shape=(
            jax.ShapeDtypeStruct((N, nst, A, 1), f32),
            jax.ShapeDtypeStruct((N, nst, A, A), f32),
        ),
        compiler_params=pltpu.CompilerParams(
            dimension_semantics=("parallel", "parallel")),
        cost_estimate=cost1,
    )(x3)

    # ---- Tiny glue: fold batch stats (training-mode BN) into scale/shift ---
    # Padded Sp-S columns are zero -> contribute nothing; divide by the true M.
    M = N * S
    colsum = jnp.sum(colsum_parts, axis=(0, 1)).reshape(A)          # (A,)
    gram = jnp.sum(gram_parts, axis=(0, 1))                         # (A, A)
    inv_m = jnp.float32(1.0 / M)
    mean = (colsum @ w_cat) * inv_m                                 # (C,)
    ey2 = jnp.sum((gram @ w_cat) * w_cat, axis=0) * inv_m           # (C,)
    var = jnp.maximum(ey2 - mean * mean, 0.0)                       # guard cancellation
    gamma = jnp.concatenate([gamma_p, gamma_a]).astype(f32)
    beta = jnp.concatenate([beta_p, beta_a]).astype(f32)
    scale = (gamma / jnp.sqrt(var + EPS)).reshape(C, 1)
    shift = beta.reshape(C, 1) - mean.reshape(C, 1) * scale

    # ---- Pass 2: matmul + folded BN affine + sigmoid(a rows), single write --
    cost2 = pl.CostEstimate(
        flops=int(N * Sp * (2 * C * A + 3 * C)),
        transcendentals=int(N * Sp * B),
        bytes_accessed=int(4 * (N * Sp * A + C * A + 2 * C + N * Sp * C)))
    pose_out, a_out = pl.pallas_call(
        functools.partial(_apply_kernel, split=BP2),
        grid=grid,
        in_specs=[
            pl.BlockSpec((None, A, ts), lambda n, s: (n, 0, s)),
            pl.BlockSpec((C, A), lambda n, s: (0, 0)),
            pl.BlockSpec((C, 1), lambda n, s: (0, 0)),
            pl.BlockSpec((C, 1), lambda n, s: (0, 0)),
        ],
        out_specs=(
            pl.BlockSpec((None, BP2, ts), lambda n, s: (n, 0, s)),
            pl.BlockSpec((None, B, ts), lambda n, s: (n, 0, s)),
        ),
        out_shape=(
            jax.ShapeDtypeStruct((N, BP2, Sp), f32),
            jax.ShapeDtypeStruct((N, B, Sp), f32),
        ),
        compiler_params=pltpu.CompilerParams(
            dimension_semantics=("parallel", "parallel")),
        cost_estimate=cost2,
    )(x3, w_t, scale, shift)

    if Sp != S:
        pose_out = pose_out[:, :, :S]
        a_out = a_out[:, :, :S]
    pose_nchw = pose_out.reshape(N, BP2, Hp, Wp)   # metadata-only when Sp == S
    a_nchw = a_out.reshape(N, B, Hp, Wp)
    return a_nchw, pose_nchw


# ---------------------------------------------------------------------------
# Pure-JAX reference (mirrors the PyTorch forward in training-mode BN).
# ---------------------------------------------------------------------------
def _reference(x_nchw, w_pose, w_a, gp, bp, ga, ba, pad):
    N, A, H, W = x_nchw.shape
    x = jnp.transpose(x_nchw, (0, 2, 3, 1))
    x = jnp.pad(x, ((0, 0), (pad, pad), (pad, pad), (0, 0)))
    Hp, Wp = H + 2 * pad, W + 2 * pad
    xf = x.reshape(-1, A)

    def bn(y, g, b):
        mu = jnp.mean(y, axis=0)
        var = jnp.mean((y - mu) ** 2, axis=0)
        return (y - mu) / jnp.sqrt(var + EPS) * g + b

    pose = bn(xf @ w_pose, gp, bp)
    act = jax.nn.sigmoid(bn(xf @ w_a, ga, ba))
    a_nchw = jnp.transpose(act.reshape(N, Hp, Wp, -1), (0, 3, 1, 2))
    pose_nchw = jnp.transpose(pose.reshape(N, Hp, Wp, -1), (0, 3, 1, 2))
    return a_nchw, pose_nchw


if __name__ == "__main__":
    # Small PrimaryCaps config: A=16 input channels, B=8 capsules, P=4 (psize=16)
    N, A, H, W = 2, 16, 8, 8
    B, P, K, stride, pad = 8, 4, 1, 1, 1
    BP2 = B * P * P  # 128

    key = jax.random.PRNGKey(0)
    ks = jax.random.split(key, 7)
    x = jax.random.normal(ks[0], (N, A, H, W), jnp.float32)

    # Conv weights: PyTorch (C_out, C_in, 1, 1) stored here as (C_in, C_out).
    w_pose = jax.random.normal(ks[1], (A, BP2), jnp.float32) * (1.0 / math.sqrt(A))
    w_a = jax.random.normal(ks[2], (A, B), jnp.float32) * (1.0 / math.sqrt(A))
    # BatchNorm affine params (deterministic, non-trivial to exercise the path).
    gamma_p = 1.0 + 0.1 * jax.random.normal(ks[3], (BP2,), jnp.float32)
    beta_p = 0.1 * jax.random.normal(ks[4], (BP2,), jnp.float32)
    gamma_a = 1.0 + 0.1 * jax.random.normal(ks[5], (B,), jnp.float32)
    beta_a = 0.1 * jax.random.normal(ks[6], (B,), jnp.float32)

    fwd = jax.jit(lambda *args: primary_caps_forward(*args, pad=pad))
    a_out, pose_out = fwd(x, w_pose, w_a, gamma_p, beta_p, gamma_a, beta_a)
    jax.block_until_ready((a_out, pose_out))

    a_ref, pose_ref = _reference(x, w_pose, w_a, gamma_p, beta_p, gamma_a, beta_a, pad)
    assert a_out.shape == (N, B, H + 2 * pad, W + 2 * pad)
    assert pose_out.shape == (N, BP2, H + 2 * pad, W + 2 * pad)
    assert jnp.allclose(a_out, a_ref, atol=1e-3, rtol=1e-3)
    assert jnp.allclose(pose_out, pose_ref, atol=1e-3, rtol=1e-3)

    print("KERNEL_OK")
</pallas_src>

<mosaic_0001>
module attributes {stable_mosaic.version = 11 : i64} {
  func.func @_stats_kernel(%arg0: i32, %arg1: i32, %arg2: memref<1x16x100xf32, #tpu.memory_space<vmem>>, %arg3: memref<1x1x16x1xf32, #tpu.memory_space<vmem>>, %arg4: memref<1x1x16x16xf32, #tpu.memory_space<vmem>>) attributes {dimension_semantics = [#tpu.dimension_semantics<parallel>, #tpu.dimension_semantics<parallel>], iteration_bounds = array<i64: 2, 1>, scalar_prefetch = 0 : i64, scratch_operands = 0 : i64, tpu.core_type = #tpu.core_type<tc>, window_params = [{transform_indices = @transform_0, window_bounds = array<i64: 1, 16, 100>}, {transform_indices = @transform_1, window_bounds = array<i64: 1, 1, 16, 1>}, {transform_indices = @transform_2, window_bounds = array<i64: 1, 1, 16, 16>}]} {
    %c0 = arith.constant 0 : index
    %c0_0 = arith.constant 0 : index
    %c0_1 = arith.constant 0 : index
    %0 = vector.load %arg2[%c0, %c0_0, %c0_1] : memref<1x16x100xf32, #tpu.memory_space<vmem>>, vector<1x16x100xf32>
    %1 = vector.shape_cast %0 : vector<1x16x100xf32> to vector<16x100xf32>
    %cst = arith.constant dense<0.000000e+00> : vector<16xf32>
    %2 = vector.multi_reduction <add>, %1, %cst [1] : vector<16x100xf32> to vector<16xf32>
    %3 = vector.shape_cast %2 : vector<16xf32> to vector<16x1xf32>
    %c0_2 = arith.constant 0 : index
    %c0_3 = arith.constant 0 : index
    %c0_4 = arith.constant 0 : index
    %c0_5 = arith.constant 0 : index
    %4 = vector.load %arg3[%c0_2, %c0_3, %c0_4, %c0_5] : memref<1x1x16x1xf32, #tpu.memory_space<vmem>>, vector<1x1x16x1xf32>
    %5 = vector.shape_cast %4 : vector<1x1x16x1xf32> to vector<16x1xf32>
    %6 = vector.shape_cast %3 : vector<16x1xf32> to vector<1x1x16x1xf32>
    tpu.vector_store %arg3[%c0_2, %c0_3, %c0_4, %c0_5], %6 {strides = array<i32>} : memref<1x1x16x1xf32, #tpu.memory_space<vmem>>, vector<1x1x16x1xf32>,
    %cst_6 = arith.constant dense<0.000000e+00> : vector<16x16xf32>
    %7 = tpu.matmul %1, %1, %cst_6 {dimension_numbers = #tpu.dot_dimension_numbers<[1], [1], [0], [0], [0, 0, 1, 0], [], []>} : vector<16x100xf32>, vector<16x100xf32>, vector<16x16xf32> -> vector<16x16xf32>
    %c0_7 = arith.constant 0 : index
    %c0_8 = arith.constant 0 : index
    %c0_9 = arith.constant 0 : index
    %c0_10 = arith.constant 0 : index
    %8 = vector.load %arg4[%c0_7, %c0_8, %c0_9, %c0_10] : memref<1x1x16x16xf32, #tpu.memory_space<vmem>>, vector<1x1x16x16xf32>
    %9 = vector.shape_cast %8 : vector<1x1x16x16xf32> to vector<16x16xf32>
    %10 = vector.shape_cast %7 : vector<16x16xf32> to vector<1x1x16x16xf32>
    tpu.vector_store %arg4[%c0_7, %c0_8, %c0_9, %c0_10], %10 {strides = array<i32>} : memref<1x1x16x16xf32, #tpu.memory_space<vmem>>, vector<1x1x16x16xf32>,
    return
  }
  func.func @transform_0(%arg0: i32, %arg1: i32) -> (i32, i32, i32) {
    %c0_i32 = arith.constant 0 : i32
    %c0_i32_0 = arith.constant 0 : i32
    return %arg0, %c0_i32, %arg1 : i32, i32, i32
  }
  func.func @transform_1(%arg0: i32, %arg1: i32) -> (i32, i32, i32, i32) {
    %c0_i32 = arith.constant 0 : i32
    %c0_i32_0 = arith.constant 0 : i32
    %c0_i32_1 = arith.constant 0 : i32
    return %arg0, %arg1, %c0_i32, %c0_i32_0 : i32, i32, i32, i32
  }
  func.func @transform_2(%arg0: i32, %arg1: i32) -> (i32, i32, i32, i32) {
    %c0_i32 = arith.constant 0 : i32
    %c0_i32_0 = arith.constant 0 : i32
    %c0_i32_1 = arith.constant 0 : i32
    return %arg0, %arg1, %c0_i32, %c0_i32_0 : i32, i32, i32, i32
  }
}

module attributes {stable_mosaic.version = 11 : i64} {
  func.func @_apply_kernel(%arg0: i32, %arg1: i32, %arg2: memref<1x16x100xf32, #tpu.memory_space<vmem>>, %arg3: memref<136x16xf32, #tpu.memory_space<vmem>>, %arg4: memref<136x1xf32, #tpu.memory_space<vmem>>, %arg5: memref<136x1xf32, #tpu.memory_space<vmem>>, %arg6: memref<1x128x100xf32, #tpu.memory_space<vmem>>, %arg7: memref<1x8x100xf32, #tpu.memory_space<vmem>>) attributes {dimension_semantics = [#tpu.dimension_semantics<parallel>, #tpu.dimension_semantics<parallel>], iteration_bounds = array<i64: 2, 1>, scalar_prefetch = 0 : i64, scratch_operands = 0 : i64, tpu.core_type = #tpu.core_type<tc>, window_params = [{transform_indices = @transform_0, window_bounds = array<i64: 1, 16, 100>}, {pipeline_mode = #tpu.pipeline_mode<synchronous>, transform_indices = @transform_1, window_bounds = array<i64: 136, 16>}, {pipeline_mode = #tpu.pipeline_mode<synchronous>, transform_indices = @transform_2, window_bounds = array<i64: 136, 1>}, {pipeline_mode = #tpu.pipeline_mode<synchronous>, transform_indices = @transform_3, window_bounds = array<i64: 136, 1>}, {transform_indices = @transform_4, window_bounds = array<i64: 1, 128, 100>}, {transform_indices = @transform_5, window_bounds = array<i64: 1, 8, 100>}]} {
    %c0 = arith.constant 0 : index
    %c0_0 = arith.constant 0 : index
    %0 = vector.load %arg3[%c0, %c0_0] : memref<136x16xf32, #tpu.memory_space<vmem>>, vector<136x16xf32>
    %c0_1 = arith.constant 0 : index
    %c0_2 = arith.constant 0 : index
    %c0_3 = arith.constant 0 : index
    %1 = vector.load %arg2[%c0_1, %c0_2, %c0_3] : memref<1x16x100xf32, #tpu.memory_space<vmem>>, vector<1x16x100xf32>
    %2 = vector.shape_cast %1 : vector<1x16x100xf32> to vector<16x100xf32>
    %cst = arith.constant dense<0.000000e+00> : vector<136x100xf32>
    %3 = tpu.matmul %0, %2, %cst {dimension_numbers = #tpu.dot_dimension_numbers<[1], [0], [0], [1], [0, 0, 1, 1], [], []>} : vector<136x16xf32>, vector<16x100xf32>, vector<136x100xf32> -> vector<136x100xf32>
    %c0_4 = arith.constant 0 : index
    %c0_5 = arith.constant 0 : index
    %4 = vector.load %arg4[%c0_4, %c0_5] : memref<136x1xf32, #tpu.memory_space<vmem>>, vector<136x1xf32>
    %5 = vector.broadcast %4 : vector<136x1xf32> to vector<136x100xf32>
    %6 = arith.mulf %3, %5 : vector<136x100xf32>
    %c0_6 = arith.constant 0 : index
    %c0_7 = arith.constant 0 : index
    %7 = vector.load %arg5[%c0_6, %c0_7] : memref<136x1xf32, #tpu.memory_space<vmem>>, vector<136x1xf32>
    %8 = vector.broadcast %7 : vector<136x1xf32> to vector<136x100xf32>
    %9 = arith.addf %6, %8 : vector<136x100xf32>
    %10 = vector.extract_strided_slice %9 {offsets = [0, 0], sizes = [128, 100], strides = [1, 1]} : vector<136x100xf32> to vector<128x100xf32>
    %c0_8 = arith.constant 0 : index
    %c0_9 = arith.constant 0 : index
    %c0_10 = arith.constant 0 : index
    %11 = vector.load %arg6[%c0_8, %c0_9, %c0_10] : memref<1x128x100xf32, #tpu.memory_space<vmem>>, vector<1x128x100xf32>
    %12 = vector.shape_cast %11 : vector<1x128x100xf32> to vector<128x100xf32>
    %13 = vector.shape_cast %10 : vector<128x100xf32> to vector<1x128x100xf32>
    tpu.vector_store %arg6[%c0_8, %c0_9, %c0_10], %13 {strides = array<i32>} : memref<1x128x100xf32, #tpu.memory_space<vmem>>, vector<1x128x100xf32>,
    %14 = vector.extract_strided_slice %9 {offsets = [128, 0], sizes = [8, 100], strides = [1, 1]} : vector<136x100xf32> to vector<8x100xf32>
    %15 = arith.negf %14 : vector<8x100xf32>
    %16 = math.exp %15 : vector<8x100xf32>
    %cst_11 = arith.constant 1.000000e+00 : f32
    %17 = vector.broadcast %cst_11 : f32 to vector<8x100xf32>
    %18 = arith.addf %17, %16 : vector<8x100xf32>
    %19 = arith.divf %17, %18 : vector<8x100xf32>
    %c0_12 = arith.constant 0 : index
    %c0_13 = arith.constant 0 : index
    %c0_14 = arith.constant 0 : index
    %20 = vector.load %arg7[%c0_12, %c0_13, %c0_14] : memref<1x8x100xf32, #tpu.memory_space<vmem>>, vector<1x8x100xf32>
    %21 = vector.shape_cast %20 : vector<1x8x100xf32> to vector<8x100xf32>
    %22 = vector.shape_cast %19 : vector<8x100xf32> to vector<1x8x100xf32>
    tpu.vector_store %arg7[%c0_12, %c0_13, %c0_14], %22 {strides = array<i32>} : memref<1x8x100xf32, #tpu.memory_space<vmem>>, vector<1x8x100xf32>,
    return
  }
  func.func @transform_0(%arg0: i32, %arg1: i32) -> (i32, i32, i32) {
    %c0_i32 = arith.constant 0 : i32
    %c0_i32_0 = arith.constant 0 : i32
    return %arg0, %c0_i32, %arg1 : i32, i32, i32
  }
  func.func @transform_1(%arg0: i32, %arg1: i32) -> (i32, i32) {
    %c0_i32 = arith.constant 0 : i32
    %c0_i32_0 = arith.constant 0 : i32
    %c0_i32_1 = arith.constant 0 : i32
    return %c0_i32, %c0_i32_0 : i32, i32
  }
  func.func @transform_2(%arg0: i32, %arg1: i32) -> (i32, i32) {
    %c0_i32 = arith.constant 0 : i32
    %c0_i32_0 = arith.constant 0 : i32
    %c0_i32_1 = arith.constant 0 : i32
    return %c0_i32, %c0_i32_0 : i32, i32
  }
  func.func @transform_3(%arg0: i32, %arg1: i32) -> (i32, i32) {
    %c0_i32 = arith.constant 0 : i32
    %c0_i32_0 = arith.constant 0 : i32
    %c0_i32_1 = arith.constant 0 : i32
    return %c0_i32, %c0_i32_0 : i32, i32
  }
  func.func @transform_4(%arg0: i32, %arg1: i32) -> (i32, i32, i32) {
    %c0_i32 = arith.constant 0 : i32
    %c0_i32_0 = arith.constant 0 : i32
    return %arg0, %c0_i32, %arg1 : i32, i32, i32
  }
  func.func @transform_5(%arg0: i32, %arg1: i32) -> (i32, i32, i32) {
    %c0_i32 = arith.constant 0 : i32
    %c0_i32_0 = arith.constant 0 : i32
    return %arg0, %c0_i32, %arg1 : i32, i32, i32
  }
}

</mosaic_0001>

<llo_original>
// kernel: mul.41
$region0: #{mul.41}
  #allocation0 [shape = 's32[1]{0}', space=sflag, size = 0x4, scoped, tag = 'scoped memory for mul.41']
  %s0 = inlined_call_operand.vmem [shape: f32[136,1], index: 0, kind: input, shape index: {}, may-alias: {0,1}]
  %s1 = inlined_call_operand.vmem [shape: f32[136,1], index: 1, kind: input, shape index: {}, may-alias: {0,1}]
  %s2 = inlined_call_operand.vmem [shape: f32[136,1], index: 2, kind: output, shape index: {}]
  %v3 = vld [vmem:[%s0] sm:$0x1]
  %v4 = vld [vmem:[%s1] sm:$0x1]
  %5 = xla_tuple %v3, %v4
  %6 = xla_tuple %5
  %v7 = vmul.f32 %v3, %v4
  %8 = xla_tuple %v7
  %9 = vst [vmem:[%s2] sm:$0x1] %v7
  %s10 = scalar_lea.vmem %s0, 1
  %v11 = vld [vmem:[%s10] sm:$0x1]
  %s12 = scalar_lea.vmem %s1, 1
  %v13 = vld [vmem:[%s12] sm:$0x1]
  %14 = xla_tuple %v11, %v13
  %15 = xla_tuple %14
  %v16 = vmul.f32 %v11, %v13
  %17 = xla_tuple %v16
  %s18 = scalar_lea.vmem %s2, 1
  %19 = vst [vmem:[%s18] sm:$0x1] %v16

// kernel: _lambda_.2
$region0: #{_lambda_.2}
  #allocation0 [shape = 'u32[]', space=smem, size = 0x4, offset = 0x4, fixed_abs, tag = 'smem constant byte address 0x4 - core index']
  #allocation1 [shape = 'u32[144,128]{1,0:T(1,128)}', space=vmem, size = 0x12000, scoped, tag = 'internal scratch']
  %s0 = inlined_call_operand.vmem [shape: f32[2,16,100], index: 0, kind: input, shape index: {}]
  %s1 = inlined_call_operand.vmem [shape: f32[2,1,16,1], index: 1, kind: output, shape index: {0}]
  %s2 = inlined_call_operand.vmem [shape: f32[2,1,16,16], index: 2, kind: output, shape index: {1}]
  %3 = xla_tuple %s1, %s2
  %s4 = sld [smem:[#allocation0]]
  $region45: #{_lambda_.2} parent=0
    _
  %s6 = ssub.s32 1, %s4
  %s7 = scalar_select 0, %s6, %s4
  loop: start=0, step=1, limit=4
  $region2: #{_lambda_.2} parent=0 // loop_pre_header
    _
  $region3: #{_lambda_.2} parent=0 // loop_header
    %s9 = sphi 0, %s13
    %p10 = scmp.ge.s32.totalorder %s9, 4
    %s16 = sphi 0, %s28
    %s17 = sphi 0, %s24
    %s18 = sphi 0, %s16
    %s19 = sphi 0, %s17
    %s20 = sphi 0, %s18
    %s21 = sphi 0, %s19
    %s33 = sphi 0, %s35
    %s36 = sphi 0, %s33
    %s37 = sphi 0, %s36
    %s53 = sphi 0, %s37
    %s61 = sphi 0, %s63
    %s64 = sphi 0, %s61
    %s65 = sphi 0, %s64
    %s81 = sphi 0, %s65
    %s89 = sphi 0, %s91
    %s92 = sphi 0, %s89
    %s93 = sphi 0, %s92
    %s109 = sphi 0, %s93
  $region4: #{_lambda_.2} parent=0 // loop_header_branch
    %12 = sbr.rel (%p10) target = $region8
  $region5: #{_lambda_.2} parent=0 // loop_body
    %s14 = ssub.s32 %s9, 1
    %s15 = ssub.s32 %s9, 2
    %s22 = sadd.s32 1, %s17
    %p23 = scmp.ge.s32.totalorder %s22, 1
    %s24 = scalar_select %p23, 0, %s22
    %s25 = sadd.s32 1, %s16
    %s26 = scalar_select %p23, %s25, %s16
    %p27 = scmp.ge.s32.totalorder %s26, 2
    %s28 = scalar_select %p27, 0, %s26
    %s29 = ssub.s32 %s16, %s28
    %s30 = ssub.s32 %s17, %s24
    %s31 = sor.u32 %s29, %s30
    %p32 = scmp.eq.s32.totalorder %s31, 0
    %s34 = sadd.s32 %s33, 1
    %s35 = scalar_select %p32, %s33, %s34
    %p38 = pneg %p32
    %p39 = scmp.eq.s32.totalorder %s9, 1
    %p40 = por %p38, %p39
    %p41 = scmp.ne.s32.totalorder %s33, %s36
    %p42 = scmp.eq.s32.totalorder %s9, 0
    %p43 = por %p41, %p42
    %p44 = scmp.ne.s32.totalorder %s33, %s36
    %p45 = scmp.eq.s32.totalorder %s14, 1
    %p46 = por %p44, %p45
    %p47 = scmp.ne.s32.totalorder %s36, %s37
    %p48 = scmp.eq.s32.totalorder %s14, 0
    %p49 = por %p47, %p48
    %p50 = scmp.ne.s32.totalorder %s36, %s37
    %p51 = scmp.eq.s32.totalorder %s15, 1
    %p52 = por %p50, %p51
    %p54 = scmp.ne.s32.totalorder %s37, %s53
    %p55 = scmp.eq.s32.totalorder %s15, 0
    %p56 = por %p54, %p55
    %s57 = ssub.s32 %s16, %s28
    %s58 = ssub.s32 %s17, %s24
    %s59 = sor.u32 %s57, %s58
    %p60 = scmp.eq.s32.totalorder %s59, 0
    %s62 = sadd.s32 %s61, 1
    %s63 = scalar_select %p60, %s61, %s62
    %p66 = pneg %p60
    %p67 = scmp.eq.s32.totalorder %s9, 1
    %p68 = por %p66, %p67
    %p69 = scmp.ne.s32.totalorder %s61, %s64
    %p70 = scmp.eq.s32.totalorder %s9, 0
    %p71 = por %p69, %p70
    %p72 = scmp.ne.s32.totalorder %s61, %s64
    %p73 = scmp.eq.s32.totalorder %s14, 1
    %p74 = por %p72, %p73
    %p75 = scmp.ne.s32.totalorder %s64, %s65
    %p76 = scmp.eq.s32.totalorder %s14, 0
    %p77 = por %p75, %p76
    %p78 = scmp.ne.s32.totalorder %s64, %s65
    %p79 = scmp.eq.s32.totalorder %s15, 1
    %p80 = por %p78, %p79
    %p82 = scmp.ne.s32.totalorder %s65, %s81
    %p83 = scmp.eq.s32.totalorder %s15, 0
    %p84 = por %p82, %p83
    %s85 = ssub.s32 %s16, %s28
    %s86 = ssub.s32 %s17, %s24
    %s87 = sor.u32 %s85, %s86
    %p88 = scmp.eq.s32.totalorder %s87, 0
    %s90 = sadd.s32 %s89, 1
    %s91 = scalar_select %p88, %s89, %s90
    %p94 = pneg %p88
    %p95 = scmp.eq.s32.totalorder %s9, 1
    %p96 = por %p94, %p95
    %p97 = scmp.ne.s32.totalorder %s89, %s92
    %p98 = scmp.eq.s32.totalorder %s9, 0
    %p99 = por %p97, %p98
    %p100 = scmp.ne.s32.totalorder %s89, %s92
    %p101 = scmp.eq.s32.totalorder %s14, 1
    %p102 = por %p100, %p101
    %p103 = scmp.ne.s32.totalorder %s92, %s93
    %p104 = scmp.eq.s32.totalorder %s14, 0
    %p105 = por %p103, %p104
    %p106 = scmp.ne.s32.totalorder %s92, %s93
    %p107 = scmp.eq.s32.totalorder %s15, 1
    %p108 = por %p106, %p107
    %p110 = scmp.ne.s32.totalorder %s93, %s109
    %p111 = scmp.eq.s32.totalorder %s15, 0
    %p112 = por %p110, %p111
    %p113 = scmp.le.s32.totalorder 1, %s9
    %p114 = scmp.lt.s32.totalorder %s9, 3
    %p115 = pnand %p113, %p114
    %p116 = pneg %p115
    // Predicated region
    $region9: #{_lambda_.2} parent=5 // pred_check
      _
    $region10: #{_lambda_.2} parent=5 // pred_check_branch
      %118 = sbr.rel (%p115) target = $region12
    $region11: #{_lambda_.2} parent=5 // pred_region
      %s119 = ssub.s32 %s9, 1
    $region12: #{_lambda_.2} parent=5 // pred_fallthru
      _
    %p120 = scmp.lt.s32.totalorder %s9, 2
    // Predicated region
    $region13: #{_lambda_.2} parent=5 // pred_check
      %p121 = pneg %p120
    $region14: #{_lambda_.2} parent=5 // pred_check_branch
      %123 = sbr.rel (%p121) target = $region16
    $region15: #{_lambda_.2} parent=5 // pred_region
      // Predicated region
      $region17: #{_lambda_.2} parent=15 // pred_check
        %p124 = pneg %p43
      $region18: #{_lambda_.2} parent=15 // pred_check_branch
        %126 = sbr.rel (%p124) target = $region20
      $region19: #{_lambda_.2} parent=15 // pred_region
        %p127 = scmp.lt.s32.totalorder %s16, 1
        %s128 = scalar_select %p127, %s16, 1
        %p129 = scmp.lt.s32.totalorder %s17, 0
        %s130 = scalar_select %p129, %s17, 0
        %s131 = smul.addr %s128, 2
        %s132 = sadd.s32 %s130, %s131
        %s133 = smul.addr %s132, 8
        %s134 = scalar_lea.vmem %s0, %s133
      $region20: #{_lambda_.2} parent=15 // pred_fallthru
        _
    $region16: #{_lambda_.2} parent=5 // pred_fallthru
      _
    %p135 = scmp.le.s32.totalorder 1, %s9
    %p136 = scmp.lt.s32.totalorder %s9, 3
    %p137 = pnand %p135, %p136
    %p138 = pneg %p137
    // Predicated region
    $region21: #{_lambda_.2} parent=5 // pred_check
      _
    $region22: #{_lambda_.2} parent=5 // pred_check_branch
      %140 = sbr.rel (%p137) target = $region24
    $region23: #{_lambda_.2} parent=5 // pred_region
      %s141 = ssub.s32 %s9, 1
      %p142 = scmp.lt.s32.totalorder %s18, 1
      %s143 = scalar_select %p142, %s18, 1
      %p144 = scmp.lt.s32.totalorder %s19, 0
      %s145 = scalar_select %p144, %s19, 0
      %s146 = smul.addr %s143, 2
      %s147 = sadd.s32 %s145, %s146
      %s148 = smul.addr %s147, 8
      %s149 = scalar_lea.vmem %s0, %s148
      %p150 = pneg %p49
      %p151 = pneg %p46
      %p152 = pneg %p77
      %p153 = pneg %p74
      %p154 = scmp.lt.s32.totalorder %s18, 1
      %s155 = scalar_select %p154, %s18, 1
      %p156 = scmp.lt.s32.totalorder %s19, 0
      %s157 = scalar_select %p156, %s19, 0
      %s158 = smul.addr %s157, 2
      %s159 = smul.addr %s155, 2
      %s160 = sadd.s32 %s158, %s159
      %s161 = smul.addr %s160, 8
      %s162 = scalar_lea.vmem %s1, %s161
      %p163 = pneg %p105
      %p164 = pneg %p102
      %p165 = scmp.lt.s32.totalorder %s18, 1
      %s166 = scalar_select %p165, %s18, 1
      %p167 = scmp.lt.s32.totalorder %s19, 0
      %s168 = scalar_select %p167, %s19, 0
      %s169 = smul.addr %s168, 2
      %s170 = smul.addr %s166, 2
      %s171 = sadd.s32 %s169, %s170
      %s172 = smul.addr %s171, 8
      %s173 = scalar_lea.vmem %s2, %s172
      %p174 = scmp.lt.s32.totalorder %s18, 1
      %s175 = scalar_select %p174, %s18, 1
      %p176 = scmp.lt.s32.totalorder %s19, 0
      %s177 = scalar_select %p176, %s19, 0
      %s178 = smul.addr %s175, 2
      %s179 = sadd.s32 %s177, %s178
      %s180 = smul.addr %s179, 8
      %s181 = scalar_lea.vmem %s0, %s180
      %p182 = scmp.lt.s32.totalorder %s18, 1
      %s183 = scalar_select %p182, %s18, 1
      %p184 = scmp.lt.s32.totalorder %s19, 0
      %s185 = scalar_select %p184, %s19, 0
      %s186 = smul.addr %s185, 2
      %s187 = smul.addr %s183, 2
      %s188 = sadd.s32 %s186, %s187
      %s189 = smul.addr %s188, 8
      %s190 = scalar_lea.vmem %s1, %s189
      %p191 = scmp.lt.s32.totalorder %s18, 1
      %s192 = scalar_select %p191, %s18, 1
      %p193 = scmp.lt.s32.totalorder %s19, 0
      %s194 = scalar_select %p193, %s19, 0
      %s195 = smul.addr %s194, 2
      %s196 = smul.addr %s192, 2
      %s197 = sadd.s32 %s195, %s196
      %s198 = smul.addr %s197, 8
      %s199 = scalar_lea.vmem %s2, %s198
      %v200 = vld [vmem:[%s181] sm:$0xff]
      %v201 = vld [vmem:[%s181 + $0x8] sm:$0xff]
      %vm202 = vcmask 818176
      %v203 = vsel %vm202, %v200, 0.0
      %204 = vadd.xlane.f32.xlu0 %v203
      %v205 = vpop.xlane.xlu0 %204
      %v206 = vsel %vm202, %v201, 0.0
      %207 = vadd.xlane.f32.xlu0 %v206
      %v208 = vpop.xlane.xlu0 %207
      %vm209 = vcmask 7168
      %210 = vst.msk [vmem:[%s190] sm:$0xff] %vm209, %v205
      %211 = vst.msk [vmem:[%s190 + $0x8] sm:$0xff] %vm209, %v208
      %v213 = vsel %vm202, %v200, 0
      %v216 = vsel %vm202, %v201, 0
      %218 = vmatprep.subr.mxu0 0.0
      %219 = vmatpush1.xpose.msra.mxu0 %v213
      %220 = vmatprep.subr.mxu0 0.0
      %221 = vmatpush1.xpose.msra.mxu0 %v216
      %222 = vmatprep.subr.mxu0 0.0
      %223 = vmatpush1.xpose.msra.mxu0 0.0
      %224 = vmatprep.subr.mxu0 0.0
      %225 = vmatpush1.xpose.msra.mxu0 0.0
      %226 = vmatprep.subr.mxu0 0.0
      %227 = vmatpush1.xpose.msra.mxu0 0.0
      %228 = vmatprep.subr.mxu0 0.0
      %229 = vmatpush1.xpose.msra.mxu0 0.0
      %230 = vmatprep.subr.mxu0 0.0
      %231 = vmatpush1.xpose.msra.mxu0 0.0
      %232 = vmatprep.subr.mxu0 0.0
      %233 = vmatpush1.xpose.msra.mxu0 0.0
      %234 = vmatprep.subr.mxu0 0.0
      %235 = vmatpush1.xpose.msra.mxu0 0.0
      %236 = vmatprep.subr.mxu0 0.0
      %237 = vmatpush1.xpose.msra.mxu0 0.0
      %238 = vmatprep.subr.mxu0 0.0
      %239 = vmatpush1.xpose.msra.mxu0 0.0
      %240 = vmatprep.subr.mxu0 0.0
      %241 = vmatpush1.xpose.msra.mxu0 0.0
      %242 = vmatprep.subr.mxu0 0.0
      %243 = vmatpush1.xpose.msra.mxu0 0.0
      %244 = vmatprep.subr.mxu0 0.0
      %245 = vmatpush1.xpose.msra.mxu0 0.0
      %246 = vmatprep.subr.mxu0 0.0
      %247 = vmatpush1.xpose.msra.mxu0 0.0
      %248 = vmatprep.subr.mxu0 0.0
      %249 = vmatpush1.xpose.msra.mxu0 0.0
      %250 = vmatprep.subr.mxu0 0.0
      %251 = vmatpush1.xpose.msra.mxu0 0.0
      %252 = vmatprep.subr.mxu0 0.0
      %253 = vmatpush1.xpose.msra.mxu0 0.0
      %254 = vmatprep.subr.mxu0 0.0
      %255 = vmatpush1.xpose.msra.mxu0 0.0
      %256 = vmatprep.subr.mxu0 0.0
      %257 = vmatpush1.xpose.msra.mxu0 0.0
      %258 = vmatprep.subr.mxu0 0.0
      %259 = vmatpush1.xpose.msra.mxu0 0.0
      %260 = vmatprep.subr.mxu0 0.0
      %261 = vmatpush1.xpose.msra.mxu0 0.0
      %262 = vmatprep.subr.mxu0 0.0
      %263 = vmatpush1.xpose.msra.mxu0 0.0
      %264 = vmatprep.subr.mxu0 0.0
      %265 = vmatpush1.xpose.msra.mxu0 0.0
      %266 = vmatprep.subr.mxu0 0.0
      %267 = vmatpush1.xpose.msra.mxu0 0.0
      %268 = vmatprep.subr.mxu0 0.0
      %269 = vmatpush1.xpose.msra.mxu0 0.0
      %270 = vmatprep.subr.mxu0 0.0
      %271 = vmatpush1.xpose.msra.mxu0 0.0
      %272 = vmatprep.subr.mxu0 0.0
      %273 = vmatpush1.xpose.msra.mxu0 0.0
      %274 = vmatprep.subr.mxu0 0.0
      %275 = vmatpush1.xpose.msra.mxu0 0.0
      %276 = vmatprep.subr.mxu0 0.0
      %277 = vmatpush1.xpose.msra.mxu0 0.0
      %278 = vmatprep.subr.mxu0 0.0
      %279 = vmatpush1.xpose.msra.mxu0 0.0
      %280 = vmatprep.subr.mxu0 0.0
      %281 = vmatpush1.xpose.msra.mxu0 0.0
      %282 = vmatprep.mubr.f32.mxu0 0.0
      %283 = vmatmul.mubr.f32.gmra.mrb[0].mxu0 %v213
      %v284 = vpop.f32.mrb[0].mxu0
      %v285 = vadd.f32 0.0, %v284
      %v286 = vpop.f32.mrb[0].mxu0
      %287 = vmatprep.mubr.f32.mxu0 0.0
      %288 = vmatmul.mubr.f32.gmra.mrb[0].mxu0 %v216
      %v289 = vpop.f32.mrb[0].mxu0
      %v290 = vadd.f32 0.0, %v289
      %v291 = vpop.f32.mrb[0].mxu0
      %292 = vdwg.mxu0
      %vm293 = vcmask 130048
      %294 = vst.msk [vmem:[%s199] sm:$0xff] %vm293, %v285
      %295 = vst.msk [vmem:[%s199 + $0x8] sm:$0xff] %vm293, %v290
      %p296 = scmp.lt.s32.totalorder %s18, 1
      %s297 = scalar_select %p296, %s18, 1
      %p298 = scmp.lt.s32.totalorder %s19, 0
      %s299 = scalar_select %p298, %s19, 0
      %s300 = smul.addr %s299, 2
      %s301 = smul.addr %s297, 2
      %s302 = sadd.s32 %s300, %s301
      %s303 = smul.addr %s302, 8
      %s304 = scalar_lea.vmem %s1, %s303
      %p305 = scmp.lt.s32.totalorder %s18, 1
      %s306 = scalar_select %p305, %s18, 1
      %p307 = scmp.lt.s32.totalorder %s19, 0
      %s308 = scalar_select %p307, %s19, 0
      %s309 = smul.addr %s308, 2
      %s310 = smul.addr %s306, 2
      %s311 = sadd.s32 %s309, %s310
      %s312 = smul.addr %s311, 8
      %s313 = scalar_lea.vmem %s2, %s312
      // Predicated region
      $region25: #{_lambda_.2} parent=23 // pred_check
        %p314 = pneg %p74
      $region26: #{_lambda_.2} parent=23 // pred_check_branch
        %316 = sbr.rel (%p314) target = $region28
      $region27: #{_lambda_.2} parent=23 // pred_region
        _
      $region28: #{_lambda_.2} parent=23 // pred_fallthru
        _
      // Predicated region
      $region29: #{_lambda_.2} parent=23 // pred_check
        %p317 = pneg %p102
      $region30: #{_lambda_.2} parent=23 // pred_check_branch
        %319 = sbr.rel (%p317) target = $region32
      $region31: #{_lambda_.2} parent=23 // pred_region
        _
      $region32: #{_lambda_.2} parent=23 // pred_fallthru
        _
    $region24: #{_lambda_.2} parent=5 // pred_fallthru
      _
    %p320 = scmp.le.s32.totalorder 2, %s9
    // Predicated region
    $region33: #{_lambda_.2} parent=5 // pred_check
      %p321 = pneg %p320
    $region34: #{_lambda_.2} parent=5 // pred_check_branch
      %323 = sbr.rel (%p321) target = $region36
    $region35: #{_lambda_.2} parent=5 // pred_region
      %s324 = ssub.s32 %s9, 2
      // Predicated region
      $region37: #{_lambda_.2} parent=35 // pred_check
        %p325 = pneg %p80
      $region38: #{_lambda_.2} parent=35 // pred_check_branch
        %327 = sbr.rel (%p325) target = $region40
      $region39: #{_lambda_.2} parent=35 // pred_region
        %p328 = scmp.lt.s32.totalorder %s20, 1
        %s329 = scalar_select %p328, %s20, 1
        %p330 = scmp.lt.s32.totalorder %s21, 0
        %s331 = scalar_select %p330, %s21, 0
        %s332 = smul.addr %s331, 2
        %s333 = smul.addr %s329, 2
        %s334 = sadd.s32 %s332, %s333
        %s335 = smul.addr %s334, 8
        %s336 = scalar_lea.vmem %s1, %s335
      $region40: #{_lambda_.2} parent=35 // pred_fallthru
        _
      // Predicated region
      $region41: #{_lambda_.2} parent=35 // pred_check
        %p337 = pneg %p108
      $region42: #{_lambda_.2} parent=35 // pred_check_branch
        %339 = sbr.rel (%p337) target = $region44
      $region43: #{_lambda_.2} parent=35 // pred_region
        %p340 = scmp.lt.s32.totalorder %s20, 1
        %s341 = scalar_select %p340, %s20, 1
        %p342 = scmp.lt.s32.totalorder %s21, 0
        %s343 = scalar_select %p342, %s21, 0
        %s344 = smul.addr %s343, 2
        %s345 = smul.addr %s341, 2
        %s346 = sadd.s32 %s344, %s345
        %s347 = smul.addr %s346, 8
        %s348 = scalar_lea.vmem %s2, %s347
      $region44: #{_lambda_.2} parent=35 // pred_fallthru
        _
    $region36: #{_lambda_.2} parent=5 // pred_fallthru
      _
  $region6: #{_lambda_.2} parent=0 // loop_footer
    %s13 = sadd.s32 1, %s9
  $region7: #{_lambda_.2} parent=0 // loop_footer_branch
    %8 = sbr.rel target = $region3
  $region8: #{_lambda_.2} parent=0 // loop_exit
    _

// kernel: _lambda_.3
$region0: #{_lambda_.3}
  #allocation0 [shape = 'u32[]', space=smem, size = 0x4, offset = 0x4, fixed_abs, tag = 'smem constant byte address 0x4 - core index']
  #allocation1 [shape = 'u32[144,128]{1,0:T(1,128)}', space=vmem, size = 0x12000, scoped, tag = 'internal scratch']
  %s0 = inlined_call_operand.vmem [shape: f32[2,16,100], index: 0, kind: input, shape index: {}]
  %s1 = inlined_call_operand.vmem [shape: f32[136,16], index: 1, kind: input, shape index: {}]
  %s2 = inlined_call_operand.vmem [shape: f32[136,1], index: 2, kind: input, shape index: {}]
  %s3 = inlined_call_operand.vmem [shape: f32[136,1], index: 3, kind: input, shape index: {}]
  %s4 = inlined_call_operand.vmem [shape: f32[2,128,100], index: 4, kind: output, shape index: {0}]
  %s5 = inlined_call_operand.vmem [shape: f32[2,8,100], index: 5, kind: output, shape index: {1}]
  %6 = xla_tuple %s4, %s5
  %s7 = sld [smem:[#allocation0]]
  $region57: #{_lambda_.3} parent=0
    _
  %s9 = ssub.s32 1, %s7
  %s10 = scalar_select 0, %s9, %s7
  loop: start=0, step=1, limit=4
  $region2: #{_lambda_.3} parent=0 // loop_pre_header
    _
  $region3: #{_lambda_.3} parent=0 // loop_header
    %s12 = sphi 0, %s16
    %p13 = scmp.ge.s32.totalorder %s12, 4
    %s19 = sphi 0, %s31
    %s20 = sphi 0, %s27
    %s21 = sphi 0, %s19
    %s22 = sphi 0, %s20
    %s23 = sphi 0, %s21
    %s24 = sphi 0, %s22
    %s36 = sphi 0, %s38
    %s39 = sphi 0, %s36
    %s40 = sphi 0, %s39
    %s56 = sphi 0, %s40
    %s60 = sphi 0, %s60
    %s62 = sphi 0, %s60
    %s63 = sphi 0, %s62
    %s77 = sphi 0, %s63
    %s81 = sphi 0, %s81
    %s83 = sphi 0, %s81
    %s84 = sphi 0, %s83
    %s98 = sphi 0, %s84
    %s102 = sphi 0, %s102
    %s104 = sphi 0, %s102
    %s105 = sphi 0, %s104
    %s119 = sphi 0, %s105
    %s127 = sphi 0, %s129
    %s130 = sphi 0, %s127
    %s131 = sphi 0, %s130
    %s147 = sphi 0, %s131
    %s155 = sphi 0, %s157
    %s158 = sphi 0, %s155
    %s159 = sphi 0, %s158
    %s175 = sphi 0, %s159
  $region4: #{_lambda_.3} parent=0 // loop_header_branch
    %15 = sbr.rel (%p13) target = $region8
  $region5: #{_lambda_.3} parent=0 // loop_body
    %s17 = ssub.s32 %s12, 1
    %s18 = ssub.s32 %s12, 2
    %s25 = sadd.s32 1, %s20
    %p26 = scmp.ge.s32.totalorder %s25, 1
    %s27 = scalar_select %p26, 0, %s25
    %s28 = sadd.s32 1, %s19
    %s29 = scalar_select %p26, %s28, %s19
    %p30 = scmp.ge.s32.totalorder %s29, 2
    %s31 = scalar_select %p30, 0, %s29
    %s32 = ssub.s32 %s19, %s31
    %s33 = ssub.s32 %s20, %s27
    %s34 = sor.u32 %s32, %s33
    %p35 = scmp.eq.s32.totalorder %s34, 0
    %s37 = sadd.s32 %s36, 1
    %s38 = scalar_select %p35, %s36, %s37
    %p41 = pneg %p35
    %p42 = scmp.eq.s32.totalorder %s12, 1
    %p43 = por %p41, %p42
    %p44 = scmp.ne.s32.totalorder %s36, %s39
    %p45 = scmp.eq.s32.totalorder %s12, 0
    %p46 = por %p44, %p45
    %p47 = scmp.ne.s32.totalorder %s36, %s39
    %p48 = scmp.eq.s32.totalorder %s17, 1
    %p49 = por %p47, %p48
    %p50 = scmp.ne.s32.totalorder %s39, %s40
    %p51 = scmp.eq.s32.totalorder %s17, 0
    %p52 = por %p50, %p51
    %p53 = scmp.ne.s32.totalorder %s39, %s40
    %p54 = scmp.eq.s32.totalorder %s18, 1
    %p55 = por %p53, %p54
    %p57 = scmp.ne.s32.totalorder %s40, %s56
    %p58 = scmp.eq.s32.totalorder %s18, 0
    %p59 = por %p57, %p58
    %s61 = sadd.s32 %s60, 1
    %p64 = scmp.eq.s32.totalorder %s12, 1
    %p65 = scmp.ne.s32.totalorder %s60, %s62
    %p66 = scmp.eq.s32.totalorder %s12, 0
    %p67 = por %p65, %p66
    %p68 = scmp.ne.s32.totalorder %s60, %s62
    %p69 = scmp.eq.s32.totalorder %s17, 1
    %p70 = por %p68, %p69
    %p71 = scmp.ne.s32.totalorder %s62, %s63
    %p72 = scmp.eq.s32.totalorder %s17, 0
    %p73 = por %p71, %p72
    %p74 = scmp.ne.s32.totalorder %s62, %s63
    %p75 = scmp.eq.s32.totalorder %s18, 1
    %p76 = por %p74, %p75
    %p78 = scmp.ne.s32.totalorder %s63, %s77
    %p79 = scmp.eq.s32.totalorder %s18, 0
    %p80 = por %p78, %p79
    %s82 = sadd.s32 %s81, 1
    %p85 = scmp.eq.s32.totalorder %s12, 1
    %p86 = scmp.ne.s32.totalorder %s81, %s83
    %p87 = scmp.eq.s32.totalorder %s12, 0
    %p88 = por %p86, %p87
    %p89 = scmp.ne.s32.totalorder %s81, %s83
    %p90 = scmp.eq.s32.totalorder %s17, 1
    %p91 = por %p89, %p90
    %p92 = scmp.ne.s32.totalorder %s83, %s84
    %p93 = scmp.eq.s32.totalorder %s17, 0
    %p94 = por %p92, %p93
    %p95 = scmp.ne.s32.totalorder %s83, %s84
    %p96 = scmp.eq.s32.totalorder %s18, 1
    %p97 = por %p95, %p96
    %p99 = scmp.ne.s32.totalorder %s84, %s98
    %p100 = scmp.eq.s32.totalorder %s18, 0
    %p101 = por %p99, %p100
    %s103 = sadd.s32 %s102, 1
    %p106 = scmp.eq.s32.totalorder %s12, 1
    %p107 = scmp.ne.s32.totalorder %s102, %s104
    %p108 = scmp.eq.s32.totalorder %s12, 0
    %p109 = por %p107, %p108
    %p110 = scmp.ne.s32.totalorder %s102, %s104
    %p111 = scmp.eq.s32.totalorder %s17, 1
    %p112 = por %p110, %p111
    %p113 = scmp.ne.s32.totalorder %s104, %s105
    %p114 = scmp.eq.s32.totalorder %s17, 0
    %p115 = por %p113, %p114
    %p116 = scmp.ne.s32.totalorder %s104, %s105
    %p117 = scmp.eq.s32.totalorder %s18, 1
    %p118 = por %p116, %p117
    %p120 = scmp.ne.s32.totalorder %s105, %s119
    %p121 = scmp.eq.s32.totalorder %s18, 0
    %p122 = por %p120, %p121
    %s123 = ssub.s32 %s19, %s31
    %s124 = ssub.s32 %s20, %s27
    %s125 = sor.u32 %s123, %s124
    %p126 = scmp.eq.s32.totalorder %s125, 0
    %s128 = sadd.s32 %s127, 1
    %s129 = scalar_select %p126, %s127, %s128
    %p132 = pneg %p126
    %p133 = scmp.eq.s32.totalorder %s12, 1
    %p134 = por %p132, %p133
    %p135 = scmp.ne.s32.totalorder %s127, %s130
    %p136 = scmp.eq.s32.totalorder %s12, 0
    %p137 = por %p135, %p136
    %p138 = scmp.ne.s32.totalorder %s127, %s130
    %p139 = scmp.eq.s32.totalorder %s17, 1
    %p140 = por %p138, %p139
    %p141 = scmp.ne.s32.totalorder %s130, %s131
    %p142 = scmp.eq.s32.totalorder %s17, 0
    %p143 = por %p141, %p142
    %p144 = scmp.ne.s32.totalorder %s130, %s131
    %p145 = scmp.eq.s32.totalorder %s18, 1
    %p146 = por %p144, %p145
    %p148 = scmp.ne.s32.totalorder %s131, %s147
    %p149 = scmp.eq.s32.totalorder %s18, 0
    %p150 = por %p148, %p149
    %s151 = ssub.s32 %s19, %s31
    %s152 = ssub.s32 %s20, %s27
    %s153 = sor.u32 %s151, %s152
    %p154 = scmp.eq.s32.totalorder %s153, 0
    %s156 = sadd.s32 %s155, 1
    %s157 = scalar_select %p154, %s155, %s156
    %p160 = pneg %p154
    %p161 = scmp.eq.s32.totalorder %s12, 1
    %p162 = por %p160, %p161
    %p163 = scmp.ne.s32.totalorder %s155, %s158
    %p164 = scmp.eq.s32.totalorder %s12, 0
    %p165 = por %p163, %p164
    %p166 = scmp.ne.s32.totalorder %s155, %s158
    %p167 = scmp.eq.s32.totalorder %s17, 1
    %p168 = por %p166, %p167
    %p169 = scmp.ne.s32.totalorder %s158, %s159
    %p170 = scmp.eq.s32.totalorder %s17, 0
    %p171 = por %p169, %p170
    %p172 = scmp.ne.s32.totalorder %s158, %s159
    %p173 = scmp.eq.s32.totalorder %s18, 1
    %p174 = por %p172, %p173
    %p176 = scmp.ne.s32.totalorder %s159, %s175
    %p177 = scmp.eq.s32.totalorder %s18, 0
    %p178 = por %p176, %p177
    %p179 = scmp.le.s32.totalorder 1, %s12
    %p180 = scmp.lt.s32.totalorder %s12, 3
    %p181 = pnand %p179, %p180
    %p182 = pneg %p181
    // Predicated region
    $region9: #{_lambda_.3} parent=5 // pred_check
      _
    $region10: #{_lambda_.3} parent=5 // pred_check_branch
      %184 = sbr.rel (%p181) target = $region12
    $region11: #{_lambda_.3} parent=5 // pred_region
      %s185 = ssub.s32 %s12, 1
      // Predicated region
      $region13: #{_lambda_.3} parent=11 // pred_check
        %p186 = pneg %p73
      $region14: #{_lambda_.3} parent=11 // pred_check_branch
        %188 = sbr.rel (%p186) target = $region16
      $region15: #{_lambda_.3} parent=11 // pred_region
        _
      $region16: #{_lambda_.3} parent=11 // pred_fallthru
        _
      // Predicated region
      $region17: #{_lambda_.3} parent=11 // pred_check
        %p189 = pneg %p94
      $region18: #{_lambda_.3} parent=11 // pred_check_branch
        %191 = sbr.rel (%p189) target = $region20
      $region19: #{_lambda_.3} parent=11 // pred_region
        _
      $region20: #{_lambda_.3} parent=11 // pred_fallthru
        _
      // Predicated region
      $region21: #{_lambda_.3} parent=11 // pred_check
        %p192 = pneg %p115
      $region22: #{_lambda_.3} parent=11 // pred_check_branch
        %194 = sbr.rel (%p192) target = $region24
      $region23: #{_lambda_.3} parent=11 // pred_region
        _
      $region24: #{_lambda_.3} parent=11 // pred_fallthru
        _
    $region12: #{_lambda_.3} parent=5 // pred_fallthru
      _
    %p195 = scmp.lt.s32.totalorder %s12, 2
    // Predicated region
    $region25: #{_lambda_.3} parent=5 // pred_check
      %p196 = pneg %p195
    $region26: #{_lambda_.3} parent=5 // pred_check_branch
      %198 = sbr.rel (%p196) target = $region28
    $region27: #{_lambda_.3} parent=5 // pred_region
      // Predicated region
      $region29: #{_lambda_.3} parent=27 // pred_check
        %p199 = pneg %p46
      $region30: #{_lambda_.3} parent=27 // pred_check_branch
        %201 = sbr.rel (%p199) target = $region32
      $region31: #{_lambda_.3} parent=27 // pred_region
        %p202 = scmp.lt.s32.totalorder %s19, 1
        %s203 = scalar_select %p202, %s19, 1
        %p204 = scmp.lt.s32.totalorder %s20, 0
        %s205 = scalar_select %p204, %s20, 0
        %s206 = smul.addr %s203, 2
        %s207 = sadd.s32 %s205, %s206
        %s208 = smul.addr %s207, 8
        %s209 = scalar_lea.vmem %s0, %s208
      $region32: #{_lambda_.3} parent=27 // pred_fallthru
        _
    $region28: #{_lambda_.3} parent=5 // pred_fallthru
      _
    %p210 = scmp.le.s32.totalorder 1, %s12
    %p211 = scmp.lt.s32.totalorder %s12, 3
    %p212 = pnand %p210, %p211
    %p213 = pneg %p212
    // Predicated region
    $region33: #{_lambda_.3} parent=5 // pred_check
      _
    $region34: #{_lambda_.3} parent=5 // pred_check_branch
      %215 = sbr.rel (%p212) target = $region36
    $region35: #{_lambda_.3} parent=5 // pred_region
      %s216 = ssub.s32 %s12, 1
      %p217 = scmp.lt.s32.totalorder %s21, 1
      %s218 = scalar_select %p217, %s21, 1
      %p219 = scmp.lt.s32.totalorder %s22, 0
      %s220 = scalar_select %p219, %s22, 0
      %s221 = smul.addr %s218, 2
      %s222 = sadd.s32 %s220, %s221
      %s223 = smul.addr %s222, 8
      %s224 = scalar_lea.vmem %s0, %s223
      %p225 = pneg %p52
      %p226 = pneg %p49
      %p227 = pneg %p73
      %p228 = pneg %p70
      %p229 = pneg %p94
      %p230 = pneg %p91
      %p231 = pneg %p115
      %p232 = pneg %p112
      %p233 = pneg %p143
      %p234 = pneg %p140
      %p235 = scmp.lt.s32.totalorder %s21, 1
      %s236 = scalar_select %p235, %s21, 1
      %p237 = scmp.lt.s32.totalorder %s22, 0
      %s238 = scalar_select %p237, %s22, 0
      %s239 = smul.addr %s236, 16
      %s240 = sadd.s32 %s238, %s239
      %s241 = smul.addr %s240, 8
      %s242 = scalar_lea.vmem %s4, %s241
      %p243 = pneg %p171
      %p244 = pneg %p168
      %p245 = scmp.lt.s32.totalorder %s21, 1
      %s246 = scalar_select %p245, %s21, 1
      %p247 = scmp.lt.s32.totalorder %s22, 0
      %s248 = scalar_select %p247, %s22, 0
      %s249 = sadd.s32 %s248, %s246
      %s250 = smul.addr %s249, 8
      %s251 = scalar_lea.vmem %s5, %s250
      %p252 = scmp.lt.s32.totalorder %s21, 1
      %s253 = scalar_select %p252, %s21, 1
      %p254 = scmp.lt.s32.totalorder %s22, 0
      %s255 = scalar_select %p254, %s22, 0
      %s256 = smul.addr %s253, 2
      %s257 = sadd.s32 %s255, %s256
      %s258 = smul.addr %s257, 8
      %s259 = scalar_lea.vmem %s0, %s258
      %p260 = scmp.lt.s32.totalorder %s21, 1
      %s261 = scalar_select %p260, %s21, 1
      %p262 = scmp.lt.s32.totalorder %s22, 0
      %s263 = scalar_select %p262, %s22, 0
      %s264 = smul.addr %s261, 16
      %s265 = sadd.s32 %s263, %s264
      %s266 = smul.addr %s265, 8
      %s267 = scalar_lea.vmem %s4, %s266
      %p268 = scmp.lt.s32.totalorder %s21, 1
      %s269 = scalar_select %p268, %s21, 1
      %p270 = scmp.lt.s32.totalorder %s22, 0
      %s271 = scalar_select %p270, %s22, 0
      %s272 = sadd.s32 %s271, %s269
      %s273 = smul.addr %s272, 8
      %s274 = scalar_lea.vmem %s5, %s273
      %v275 = vld [vmem:[%s1] sm:$0xff]
      %v276 = vld [vmem:[%s1 + $0x8] sm:$0xff]
      %v277 = vld [vmem:[%s1 + $0x10] sm:$0xff]
      %v278 = vld [vmem:[%s1 + $0x18] sm:$0xff]
      %v279 = vld [vmem:[%s1 + $0x20] sm:$0xff]
      %v280 = vld [vmem:[%s1 + $0x28] sm:$0xff]
      %v281 = vld [vmem:[%s1 + $0x30] sm:$0xff]
      %v282 = vld [vmem:[%s1 + $0x38] sm:$0xff]
      %v283 = vld [vmem:[%s1 + $0x40] sm:$0xff]
      %v284 = vld [vmem:[%s1 + $0x48] sm:$0xff]
      %v285 = vld [vmem:[%s1 + $0x50] sm:$0xff]
      %v286 = vld [vmem:[%s1 + $0x58] sm:$0xff]
      %v287 = vld [vmem:[%s1 + $0x60] sm:$0xff]
      %v288 = vld [vmem:[%s1 + $0x68] sm:$0xff]
      %v289 = vld [vmem:[%s1 + $0x70] sm:$0xff]
      %v290 = vld [vmem:[%s1 + $0x78] sm:$0xff]
      %v291 = vld [vmem:[%s1 + $0x80] sm:$0xff]
      %v292 = vld [vmem:[%s259] sm:$0xff]
      %v293 = vld [vmem:[%s259 + $0x8] sm:$0xff]
      %vm294 = vcmask 130048
      %v296 = vsel %vm294, %v275, 0
      %v299 = vsel %vm294, %v276, 0
      %v302 = vsel %vm294, %v277, 0
      %v305 = vsel %vm294, %v278, 0
      %v308 = vsel %vm294, %v279, 0
      %v311 = vsel %vm294, %v280, 0
      %v314 = vsel %vm294, %v281, 0
      %v317 = vsel %vm294, %v282, 0
      %v320 = vsel %vm294, %v283, 0
      %v323 = vsel %vm294, %v284, 0
      %v326 = vsel %vm294, %v285, 0
      %v329 = vsel %vm294, %v286, 0
      %v332 = vsel %vm294, %v287, 0
      %v335 = vsel %vm294, %v288, 0
      %v338 = vsel %vm294, %v289, 0
      %v341 = vsel %vm294, %v290, 0
      %v344 = vsel %vm294, %v291, 0
      %346 = vmatprep.subr.mxu0 0.0
      %347 = vmatpush1.msra.mxu0 %v292
      %348 = vmatprep.subr.mxu0 0.0
      %349 = vmatpush1.msra.mxu0 %v293
      %350 = vmatprep.subr.mxu0 0.0
      %351 = vmatpush1.msra.mxu0 0.0
      %352 = vmatprep.subr.mxu0 0.0
      %353 = vmatpush1.msra.mxu0 0.0
      %354 = vmatprep.subr.mxu0 0.0
      %355 = vmatpush1.msra.mxu0 0.0
      %356 = vmatprep.subr.mxu0 0.0
      %357 = vmatpush1.msra.mxu0 0.0
      %358 = vmatprep.subr.mxu0 0.0
      %359 = vmatpush1.msra.mxu0 0.0
      %360 = vmatprep.subr.mxu0 0.0
      %361 = vmatpush1.msra.mxu0 0.0
      %362 = vmatprep.subr.mxu0 0.0
      %363 = vmatpush1.msra.mxu0 0.0
      %364 = vmatprep.subr.mxu0 0.0
      %365 = vmatpush1.msra.mxu0 0.0
      %366 = vmatprep.subr.mxu0 0.0
      %367 = vmatpush1.msra.mxu0 0.0
      %368 = vmatprep.subr.mxu0 0.0
      %369 = vmatpush1.msra.mxu0 0.0
      %370 = vmatprep.subr.mxu0 0.0
      %371 = vmatpush1.msra.mxu0 0.0
      %372 = vmatprep.subr.mxu0 0.0
      %373 = vmatpush1.msra.mxu0 0.0
      %374 = vmatprep.subr.mxu0 0.0
      %375 = vmatpush1.msra.mxu0 0.0
      %376 = vmatprep.subr.mxu0 0.0
      %377 = vmatpush1.msra.mxu0 0.0
      %378 = vmatprep.subr.mxu0 0.0
      %379 = vmatpush1.msra.mxu0 0.0
      %380 = vmatprep.subr.mxu0 0.0
      %381 = vmatpush1.msra.mxu0 0.0
      %382 = vmatprep.subr.mxu0 0.0
      %383 = vmatpush1.msra.mxu0 0.0
      %384 = vmatprep.subr.mxu0 0.0
      %385 = vmatpush1.msra.mxu0 0.0
      %386 = vmatprep.subr.mxu0 0.0
      %387 = vmatpush1.msra.mxu0 0.0
      %388 = vmatprep.subr.mxu0 0.0
      %389 = vmatpush1.msra.mxu0 0.0
      %390 = vmatprep.subr.mxu0 0.0
      %391 = vmatpush1.msra.mxu0 0.0
      %392 = vmatprep.subr.mxu0 0.0
      %393 = vmatpush1.msra.mxu0 0.0
      %394 = vmatprep.subr.mxu0 0.0
      %395 = vmatpush1.msra.mxu0 0.0
      %396 = vmatprep.subr.mxu0 0.0
      %397 = vmatpush1.msra.mxu0 0.0
      %398 = vmatprep.subr.mxu0 0.0
      %399 = vmatpush1.msra.mxu0 0.0
      %400 = vmatprep.subr.mxu0 0.0
      %401 = vmatpush1.msra.mxu0 0.0
      %402 = vmatprep.subr.mxu0 0.0
      %403 = vmatpush1.msra.mxu0 0.0
      %404 = vmatprep.subr.mxu0 0.0
      %405 = vmatpush1.msra.mxu0 0.0
      %406 = vmatprep.subr.mxu0 0.0
      %407 = vmatpush1.msra.mxu0 0.0
      %408 = vmatprep.subr.mxu0 0.0
      %409 = vmatpush1.msra.mxu0 0.0
      %410 = vmatprep.mubr.f32.mxu0 0.0
      %411 = vmatmul.mubr.f32.gmra.mrb[0].mxu0 %v296
      %v412 = vpop.f32.mrb[0].mxu0
      %v413 = vadd.f32 0.0, %v412
      %v414 = vpop.f32.mrb[0].mxu0
      %415 = vmatprep.mubr.f32.mxu0 0.0
      %416 = vmatmul.mubr.f32.gmra.mrb[0].mxu0 %v299
      %v417 = vpop.f32.mrb[0].mxu0
      %v418 = vadd.f32 0.0, %v417
      %v419 = vpop.f32.mrb[0].mxu0
      %420 = vmatprep.mubr.f32.mxu0 0.0
      %421 = vmatmul.mubr.f32.gmra.mrb[0].mxu0 %v302
      %v422 = vpop.f32.mrb[0].mxu0
      %v423 = vadd.f32 0.0, %v422
      %v424 = vpop.f32.mrb[0].mxu0
      %425 = vmatprep.mubr.f32.mxu0 0.0
      %426 = vmatmul.mubr.f32.gmra.mrb[0].mxu0 %v305
      %v427 = vpop.f32.mrb[0].mxu0
      %v428 = vadd.f32 0.0, %v427
      %v429 = vpop.f32.mrb[0].mxu0
      %430 = vmatprep.mubr.f32.mxu0 0.0
      %431 = vmatmul.mubr.f32.gmra.mrb[0].mxu0 %v308
      %v432 = vpop.f32.mrb[0].mxu0
      %v433 = vadd.f32 0.0, %v432
      %v434 = vpop.f32.mrb[0].mxu0
      %435 = vmatprep.mubr.f32.mxu0 0.0
      %436 = vmatmul.mubr.f32.gmra.mrb[0].mxu0 %v311
      %v437 = vpop.f32.mrb[0].mxu0
      %v438 = vadd.f32 0.0, %v437
      %v439 = vpop.f32.mrb[0].mxu0
      %440 = vmatprep.mubr.f32.mxu0 0.0
      %441 = vmatmul.mubr.f32.gmra.mrb[0].mxu0 %v314
      %v442 = vpop.f32.mrb[0].mxu0
      %v443 = vadd.f32 0.0, %v442
      %v444 = vpop.f32.mrb[0].mxu0
      %445 = vmatprep.mubr.f32.mxu0 0.0
      %446 = vmatmul.mubr.f32.gmra.mrb[0].mxu0 %v317
      %v447 = vpop.f32.mrb[0].mxu0
      %v448 = vadd.f32 0.0, %v447
      %v449 = vpop.f32.mrb[0].mxu0
      %450 = vmatprep.mubr.f32.mxu0 0.0
      %451 = vmatmul.mubr.f32.gmra.mrb[0].mxu0 %v320
      %v452 = vpop.f32.mrb[0].mxu0
      %v453 = vadd.f32 0.0, %v452
      %v454 = vpop.f32.mrb[0].mxu0
      %455 = vmatprep.mubr.f32.mxu0 0.0
      %456 = vmatmul.mubr.f32.gmra.mrb[0].mxu0 %v323
      %v457 = vpop.f32.mrb[0].mxu0
      %v458 = vadd.f32 0.0, %v457
      %v459 = vpop.f32.mrb[0].mxu0
      %460 = vmatprep.mubr.f32.mxu0 0.0
      %461 = vmatmul.mubr.f32.gmra.mrb[0].mxu0 %v326
      %v462 = vpop.f32.mrb[0].mxu0
      %v463 = vadd.f32 0.0, %v462
      %v464 = vpop.f32.mrb[0].mxu0
      %465 = vmatprep.mubr.f32.mxu0 0.0
      %466 = vmatmul.mubr.f32.gmra.mrb[0].mxu0 %v329
      %v467 = vpop.f32.mrb[0].mxu0
      %v468 = vadd.f32 0.0, %v467
      %v469 = vpop.f32.mrb[0].mxu0
      %470 = vmatprep.mubr.f32.mxu0 0.0
      %471 = vmatmul.mubr.f32.gmra.mrb[0].mxu0 %v332
      %v472 = vpop.f32.mrb[0].mxu0
      %v473 = vadd.f32 0.0, %v472
      %v474 = vpop.f32.mrb[0].mxu0
      %475 = vmatprep.mubr.f32.mxu0 0.0
      %476 = vmatmul.mubr.f32.gmra.mrb[0].mxu0 %v335
      %v477 = vpop.f32.mrb[0].mxu0
      %v478 = vadd.f32 0.0, %v477
      %v479 = vpop.f32.mrb[0].mxu0
      %480 = vmatprep.mubr.f32.mxu0 0.0
      %481 = vmatmul.mubr.f32.gmra.mrb[0].mxu0 %v338
      %v482 = vpop.f32.mrb[0].mxu0
      %v483 = vadd.f32 0.0, %v482
      %v484 = vpop.f32.mrb[0].mxu0
      %485 = vmatprep.mubr.f32.mxu0 0.0
      %486 = vmatmul.mubr.f32.gmra.mrb[0].mxu0 %v341
      %v487 = vpop.f32.mrb[0].mxu0
      %v488 = vadd.f32 0.0, %v487
      %v489 = vpop.f32.mrb[0].mxu0
      %490 = vmatprep.mubr.f32.mxu0 0.0
      %491 = vmatmul.mubr.f32.gmra.mrb[0].mxu0 %v344
      %v492 = vpop.f32.mrb[0].mxu0
      %v493 = vadd.f32 0.0, %v492
      %v494 = vpop.f32.mrb[0].mxu0
      %495 = vdwg.mxu0
      %v496 = vld [vmem:[%s2] sm:$0xff]
      %v497 = vld [vmem:[%s2 + $0x8] sm:$0xff]
      %v498 = vld [vmem:[%s2 + $0x10] sm:$0xff]
      %v499 = vld [vmem:[%s2 + $0x18] sm:$0xff]
      %v500 = vld [vmem:[%s2 + $0x20] sm:$0xff]
      %v501 = vld [vmem:[%s2 + $0x28] sm:$0xff]
      %v502 = vld [vmem:[%s2 + $0x30] sm:$0xff]
      %v503 = vld [vmem:[%s2 + $0x38] sm:$0xff]
      %v504 = vld [vmem:[%s2 + $0x40] sm:$0xff]
      %v505 = vld [vmem:[%s2 + $0x48] sm:$0xff]
      %v506 = vld [vmem:[%s2 + $0x50] sm:$0xff]
      %v507 = vld [vmem:[%s2 + $0x58] sm:$0xff]
      %v508 = vld [vmem:[%s2 + $0x60] sm:$0xff]
      %v509 = vld [vmem:[%s2 + $0x68] sm:$0xff]
      %v510 = vld [vmem:[%s2 + $0x70] sm:$0xff]
      %v511 = vld [vmem:[%s2 + $0x78] sm:$0xff]
      %v512 = vld [vmem:[%s2 + $0x80] sm:$0xff]
      %514 = vset.pattern.permute.xlu0 0
      %515 = vperm.xlu0 %514, %v496
      %v516 = vpop.permute.xlu0 %515
      %519 = vset.pattern.permute.xlu0 0
      %520 = vperm.xlu0 %519, %v497
      %v521 = vpop.permute.xlu0 %520
      %524 = vset.pattern.permute.xlu0 0
      %525 = vperm.xlu0 %524, %v498
      %v526 = vpop.permute.xlu0 %525
      %529 = vset.pattern.permute.xlu0 0
      %530 = vperm.xlu0 %529, %v499
      %v531 = vpop.permute.xlu0 %530
      %534 = vset.pattern.permute.xlu0 0
      %535 = vperm.xlu0 %534, %v500
      %v536 = vpop.permute.xlu0 %535
      %539 = vset.pattern.permute.xlu0 0
      %540 = vperm.xlu0 %539, %v501
      %v541 = vpop.permute.xlu0 %540
      %544 = vset.pattern.permute.xlu0 0
      %545 = vperm.xlu0 %544, %v502
      %v546 = vpop.permute.xlu0 %545
      %549 = vset.pattern.permute.xlu0 0
      %550 = vperm.xlu0 %549, %v503
      %v551 = vpop.permute.xlu0 %550
      %554 = vset.pattern.permute.xlu0 0
      %555 = vperm.xlu0 %554, %v504
      %v556 = vpop.permute.xlu0 %555
      %559 = vset.pattern.permute.xlu0 0
      %560 = vperm.xlu0 %559, %v505
      %v561 = vpop.permute.xlu0 %560
      %564 = vset.pattern.permute.xlu0 0
      %565 = vperm.xlu0 %564, %v506
      %v566 = vpop.permute.xlu0 %565
      %569 = vset.pattern.permute.xlu0 0
      %570 = vperm.xlu0 %569, %v507
      %v571 = vpop.permute.xlu0 %570
      %574 = vset.pattern.permute.xlu0 0
      %575 = vperm.xlu0 %574, %v508
      %v576 = vpop.permute.xlu0 %575
      %579 = vset.pattern.permute.xlu0 0
      %580 = vperm.xlu0 %579, %v509
      %v581 = vpop.permute.xlu0 %580
      %584 = vset.pattern.permute.xlu0 0
      %585 = vperm.xlu0 %584, %v510
      %v586 = vpop.permute.xlu0 %585
      %589 = vset.pattern.permute.xlu0 0
      %590 = vperm.xlu0 %589, %v511
      %v591 = vpop.permute.xlu0 %590
      %594 = vset.pattern.permute.xlu0 0
      %595 = vperm.xlu0 %594, %v512
      %v596 = vpop.permute.xlu0 %595
      %v598 = vmul.f32 %v413, %v516
      %v599 = vmul.f32 %v418, %v521
      %v600 = vmul.f32 %v423, %v526
      %v601 = vmul.f32 %v428, %v531
      %v602 = vmul.f32 %v433, %v536
      %v603 = vmul.f32 %v438, %v541
      %v604 = vmul.f32 %v443, %v546
      %v605 = vmul.f32 %v448, %v551
      %v606 = vmul.f32 %v453, %v556
      %v607 = vmul.f32 %v458, %v561
      %v608 = vmul.f32 %v463, %v566
      %v609 = vmul.f32 %v468, %v571
      %v610 = vmul.f32 %v473, %v576
      %v611 = vmul.f32 %v478, %v581
      %v612 = vmul.f32 %v483, %v586
      %v613 = vmul.f32 %v488, %v591
      %v614 = vmul.f32 %v493, %v596
      %v615 = vld [vmem:[%s3] sm:$0xff]
      %v616 = vld [vmem:[%s3 + $0x8] sm:$0xff]
      %v617 = vld [vmem:[%s3 + $0x10] sm:$0xff]
      %v618 = vld [vmem:[%s3 + $0x18] sm:$0xff]
      %v619 = vld [vmem:[%s3 + $0x20] sm:$0xff]
      %v620 = vld [vmem:[%s3 + $0x28] sm:$0xff]
      %v621 = vld [vmem:[%s3 + $0x30] sm:$0xff]
      %v622 = vld [vmem:[%s3 + $0x38] sm:$0xff]
      %v623 = vld [vmem:[%s3 + $0x40] sm:$0xff]
      %v624 = vld [vmem:[%s3 + $0x48] sm:$0xff]
      %v625 = vld [vmem:[%s3 + $0x50] sm:$0xff]
      %v626 = vld [vmem:[%s3 + $0x58] sm:$0xff]
      %v627 = vld [vmem:[%s3 + $0x60] sm:$0xff]
      %v628 = vld [vmem:[%s3 + $0x68] sm:$0xff]
      %v629 = vld [vmem:[%s3 + $0x70] sm:$0xff]
      %v630 = vld [vmem:[%s3 + $0x78] sm:$0xff]
      %v631 = vld [vmem:[%s3 + $0x80] sm:$0xff]
      %633 = vset.pattern.permute.xlu0 0
      %634 = vperm.xlu0 %633, %v615
      %v635 = vpop.permute.xlu0 %634
      %638 = vset.pattern.permute.xlu0 0
      %639 = vperm.xlu0 %638, %v616
      %v640 = vpop.permute.xlu0 %639
      %643 = vset.pattern.permute.xlu0 0
      %644 = vperm.xlu0 %643, %v617
      %v645 = vpop.permute.xlu0 %644
      %648 = vset.pattern.permute.xlu0 0
      %649 = vperm.xlu0 %648, %v618
      %v650 = vpop.permute.xlu0 %649
      %653 = vset.pattern.permute.xlu0 0
      %654 = vperm.xlu0 %653, %v619
      %v655 = vpop.permute.xlu0 %654
      %658 = vset.pattern.permute.xlu0 0
      %659 = vperm.xlu0 %658, %v620
      %v660 = vpop.permute.xlu0 %659
      %663 = vset.pattern.permute.xlu0 0
      %664 = vperm.xlu0 %663, %v621
      %v665 = vpop.permute.xlu0 %664
      %668 = vset.pattern.permute.xlu0 0
      %669 = vperm.xlu0 %668, %v622
      %v670 = vpop.permute.xlu0 %669
      %673 = vset.pattern.permute.xlu0 0
      %674 = vperm.xlu0 %673, %v623
      %v675 = vpop.permute.xlu0 %674
      %678 = vset.pattern.permute.xlu0 0
      %679 = vperm.xlu0 %678, %v624
      %v680 = vpop.permute.xlu0 %679
      %683 = vset.pattern.permute.xlu0 0
      %684 = vperm.xlu0 %683, %v625
      %v685 = vpop.permute.xlu0 %684
      %688 = vset.pattern.permute.xlu0 0
      %689 = vperm.xlu0 %688, %v626
      %v690 = vpop.permute.xlu0 %689
      %693 = vset.pattern.permute.xlu0 0
      %694 = vperm.xlu0 %693, %v627
      %v695 = vpop.permute.xlu0 %694
      %698 = vset.pattern.permute.xlu0 0
      %699 = vperm.xlu0 %698, %v628
      %v700 = vpop.permute.xlu0 %699
      %703 = vset.pattern.permute.xlu0 0
      %704 = vperm.xlu0 %703, %v629
      %v705 = vpop.permute.xlu0 %704
      %708 = vset.pattern.permute.xlu0 0
      %709 = vperm.xlu0 %708, %v630
      %v710 = vpop.permute.xlu0 %709
      %713 = vset.pattern.permute.xlu0 0
      %714 = vperm.xlu0 %713, %v631
      %v715 = vpop.permute.xlu0 %714
      %v717 = vadd.f32 %v598, %v635
      %v718 = vadd.f32 %v599, %v640
      %v719 = vadd.f32 %v600, %v645
      %v720 = vadd.f32 %v601, %v650
      %v721 = vadd.f32 %v602, %v655
      %v722 = vadd.f32 %v603, %v660
      %v723 = vadd.f32 %v604, %v665
      %v724 = vadd.f32 %v605, %v670
      %v725 = vadd.f32 %v606, %v675
      %v726 = vadd.f32 %v607, %v680
      %v727 = vadd.f32 %v608, %v685
      %v728 = vadd.f32 %v609, %v690
      %v729 = vadd.f32 %v610, %v695
      %v730 = vadd.f32 %v611, %v700
      %v731 = vadd.f32 %v612, %v705
      %v732 = vadd.f32 %v613, %v710
      %v733 = vadd.f32 %v614, %v715
      %vm734 = vcmask 818176
      %735 = vst.msk [vmem:[%s267] sm:$0xff] %vm734, %v717
      %736 = vst.msk [vmem:[%s267 + $0x8] sm:$0xff] %vm734, %v718
      %737 = vst.msk [vmem:[%s267 + $0x10] sm:$0xff] %vm734, %v719
      %738 = vst.msk [vmem:[%s267 + $0x18] sm:$0xff] %vm734, %v720
      %739 = vst.msk [vmem:[%s267 + $0x20] sm:$0xff] %vm734, %v721
      %740 = vst.msk [vmem:[%s267 + $0x28] sm:$0xff] %vm734, %v722
      %741 = vst.msk [vmem:[%s267 + $0x30] sm:$0xff] %vm734, %v723
      %742 = vst.msk [vmem:[%s267 + $0x38] sm:$0xff] %vm734, %v724
      %743 = vst.msk [vmem:[%s267 + $0x40] sm:$0xff] %vm734, %v725
      %744 = vst.msk [vmem:[%s267 + $0x48] sm:$0xff] %vm734, %v726
      %745 = vst.msk [vmem:[%s267 + $0x50] sm:$0xff] %vm734, %v727
      %746 = vst.msk [vmem:[%s267 + $0x58] sm:$0xff] %vm734, %v728
      %747 = vst.msk [vmem:[%s267 + $0x60] sm:$0xff] %vm734, %v729
      %748 = vst.msk [vmem:[%s267 + $0x68] sm:$0xff] %vm734, %v730
      %749 = vst.msk [vmem:[%s267 + $0x70] sm:$0xff] %vm734, %v731
      %750 = vst.msk [vmem:[%s267 + $0x78] sm:$0xff] %vm734, %v732
      %v751 = vxor.u32 %v733, 2147483648
      %v752 = vmul.f32 %v751, 1.442695
      %v753 = vpow.pop %v752
      %v754 = vadd.f32 %v753, 1.0
      %v755 = vrcp.pop %v754
      %v756 = vmul.f32 1.0, %v755
      %757 = vst.msk [vmem:[%s274] sm:$0xff] %vm734, %v756
      %p758 = scmp.lt.s32.totalorder %s21, 1
      %s759 = scalar_select %p758, %s21, 1
      %p760 = scmp.lt.s32.totalorder %s22, 0
      %s761 = scalar_select %p760, %s22, 0
      %s762 = smul.addr %s759, 16
      %s763 = sadd.s32 %s761, %s762
      %s764 = smul.addr %s763, 8
      %s765 = scalar_lea.vmem %s4, %s764
      %p766 = scmp.lt.s32.totalorder %s21, 1
      %s767 = scalar_select %p766, %s21, 1
      %p768 = scmp.lt.s32.totalorder %s22, 0
      %s769 = scalar_select %p768, %s22, 0
      %s770 = sadd.s32 %s769, %s767
      %s771 = smul.addr %s770, 8
      %s772 = scalar_lea.vmem %s5, %s771
      // Predicated region
      $region37: #{_lambda_.3} parent=35 // pred_check
        %p773 = pneg %p140
      $region38: #{_lambda_.3} parent=35 // pred_check_branch
        %775 = sbr.rel (%p773) target = $region40
      $region39: #{_lambda_.3} parent=35 // pred_region
        _
      $region40: #{_lambda_.3} parent=35 // pred_fallthru
        _
      // Predicated region
      $region41: #{_lambda_.3} parent=35 // pred_check
        %p776 = pneg %p168
      $region42: #{_lambda_.3} parent=35 // pred_check_branch
        %778 = sbr.rel (%p776) target = $region44
      $region43: #{_lambda_.3} parent=35 // pred_region
        _
      $region44: #{_lambda_.3} parent=35 // pred_fallthru
        _
    $region36: #{_lambda_.3} parent=5 // pred_fallthru
      _
    %p779 = scmp.le.s32.totalorder 2, %s12
    // Predicated region
    $region45: #{_lambda_.3} parent=5 // pred_check
      %p780 = pneg %p779
    $region46: #{_lambda_.3} parent=5 // pred_check_branch
      %782 = sbr.rel (%p780) target = $region48
    $region47: #{_lambda_.3} parent=5 // pred_region
      %s783 = ssub.s32 %s12, 2
      // Predicated region
      $region49: #{_lambda_.3} parent=47 // pred_check
        %p784 = pneg %p146
      $region50: #{_lambda_.3} parent=47 // pred_check_branch
        %786 = sbr.rel (%p784) target = $region52
      $region51: #{_lambda_.3} parent=47 // pred_region
        %p787 = scmp.lt.s32.totalorder %s23, 1
        %s788 = scalar_select %p787, %s23, 1
        %p789 = scmp.lt.s32.totalorder %s24, 0
        %s790 = scalar_select %p789, %s24, 0
        %s791 = smul.addr %s788, 16
        %s792 = sadd.s32 %s790, %s791
        %s793 = smul.addr %s792, 8
        %s794 = scalar_lea.vmem %s4, %s793
      $region52: #{_lambda_.3} parent=47 // pred_fallthru
        _
      // Predicated region
      $region53: #{_lambda_.3} parent=47 // pred_check
        %p795 = pneg %p174
      $region54: #{_lambda_.3} parent=47 // pred_check_branch
        %797 = sbr.rel (%p795) target = $region56
      $region55: #{_lambda_.3} parent=47 // pred_region
        %p798 = scmp.lt.s32.totalorder %s23, 1
        %s799 = scalar_select %p798, %s23, 1
        %p800 = scmp.lt.s32.totalorder %s24, 0
        %s801 = scalar_select %p800, %s24, 0
        %s802 = sadd.s32 %s801, %s799
        %s803 = smul.addr %s802, 8
        %s804 = scalar_lea.vmem %s5, %s803
      $region56: #{_lambda_.3} parent=47 // pred_fallthru
        _
    $region48: #{_lambda_.3} parent=5 // pred_fallthru
      _
  $region6: #{_lambda_.3} parent=0 // loop_footer
    %s16 = sadd.s32 1, %s12
  $region7: #{_lambda_.3} parent=0 // loop_footer_branch
    %11 = sbr.rel target = $region3
  $region8: #{_lambda_.3} parent=0 // loop_exit
    _

</llo_original>
